<compile_context>
chip_gen: v6e
topology: v6e:2x2x1
jax: 0.10.0
libtpu: 0.0.40
codegen_flags: <defaults>
</compile_context>

<pallas_src>
import jax
import jax.numpy as jnp
from jax.experimental import pallas as pl
from jax.experimental.pallas import tpu as pltpu


def _noise_injection_kernel(w_ref, img_ref, noise_ref, out_ref):
    # out = image + weight * noise.  jnp broadcasting handles channel-broadcast
    # noise blocks; arithmetic runs in the promoted dtype, cast once on store.
    out_ref[...] = (img_ref[...] + w_ref[...] * noise_ref[...]).astype(out_ref.dtype)


def _vmem_budget_and_limit():
    """Per-generation VMEM sizing: (block-sizing budget, vmem_limit_bytes)."""
    try:
        cap = int(pltpu.get_tpu_info().vmem_capacity_bytes)
    except Exception:
        cap = 64 * 1024 * 1024  # conservative fallback (v7x per-TC physical)
    # Raise the scoped limit above the small defaults (16/32 MiB) but keep
    # headroom under physical capacity (v5e/v6e: 128 MiB, v7x: 64 MiB per TC).
    limit = max(32 * 1024 * 1024, min(cap - 16 * 1024 * 1024, 96 * 1024 * 1024))
    # Budget covers the 3 double-buffered streams (image, noise, out); the
    # remaining third is headroom for the weight block + Mosaic internals.
    return (limit * 2) // 3, limit


def _pick_tiling(batch, lane_len, bytes_per_row_per_lane, budget):
    """Choose (batch_block, lane_block) for grid (cdiv(batch, bb), lane_len // ln)."""

    def can_halve(x):
        return x % 2 == 0 and (x // 2) % 128 == 0  # keep lane blocks 128-dense

    ln = lane_len
    # Shrink the lane block until a single batch row fits the budget.
    while bytes_per_row_per_lane * ln > budget and can_halve(ln):
        ln //= 2
    bb = max(1, min(batch, budget // max(1, bytes_per_row_per_lane * ln)))
    if bb < batch and bb > 8:
        bb = (bb // 8) * 8  # sublane-aligned batch blocks
    # v7x megacore: ensure >= 2 grid steps so both TensorCores get work.
    # Free on v5e/v6e (single TC: the grid is just a short serial loop).
    if pl.cdiv(batch, bb) * (lane_len // ln) < 2:
        if can_halve(ln):
            ln //= 2
        elif batch > 1:
            bb = pl.cdiv(batch, 2)
    return bb, ln


def noise_injection_2d(weight: jax.Array, image: jax.Array, noise: jax.Array) -> jax.Array:
    """Pallas equivalent of NoiseInjection2D.forward: image + weight * noise."""
    b, c, h, w = image.shape
    hw = h * w
    out_dtype = jnp.result_type(image.dtype, weight.dtype, noise.dtype)
    budget, vmem_limit = _vmem_budget_and_limit()
    compiler_params = pltpu.CompilerParams(
        dimension_semantics=("parallel", "parallel"),
        vmem_limit_bytes=vmem_limit,
    )

    i_isz = jnp.dtype(image.dtype).itemsize
    n_isz = jnp.dtype(noise.dtype).itemsize
    o_isz = jnp.dtype(out_dtype).itemsize

    if noise.shape == (b, 1, h, w):
        # Channel-broadcast noise: keep it at its natural extent and broadcast
        # on the VPU inside the kernel (C x less noise HBM traffic).
        img3 = image.reshape(b, c, hw)
        noi3 = noise.reshape(b, 1, hw)
        w3 = jnp.broadcast_to(weight.reshape(1, c, 1), (1, c, hw))  # tiny, lane-dense

        c_pad = -(-c // 8) * 8  # sublane-padding estimate for VMEM accounting
        bprpl = 2 * (c_pad * i_isz + c_pad * o_isz + 8 * n_isz)
        bb, lhw = _pick_tiling(b, hw, bprpl, budget)

        out = pl.pallas_call(
            _noise_injection_kernel,
            out_shape=jax.ShapeDtypeStruct((b, c, hw), out_dtype),
            grid_spec=pltpu.PrefetchScalarGridSpec(
                num_scalar_prefetch=0,
                grid=(pl.cdiv(b, bb), hw // lhw),
                in_specs=[
                    pl.BlockSpec((1, c, lhw), lambda i, j: (0, 0, j)),
                    pl.BlockSpec((bb, c, lhw), lambda i, j: (i, 0, j)),
                    pl.BlockSpec((bb, 1, lhw), lambda i, j: (i, 0, j)),
                ],
                out_specs=pl.BlockSpec((bb, c, lhw), lambda i, j: (i, 0, j)),
            ),
            compiler_params=compiler_params,
        )(w3, img3, noi3)
        return out.reshape(b, c, h, w)

    if noise.shape != image.shape:
        # TODO(synk): other (rare) broadcast patterns fall back to a wrapper-side
        # broadcast; the common cases (full shape, channel-1) are handled natively.
        noise = jnp.broadcast_to(noise, image.shape)

    # Full-shape noise: lane+sublane dense 2-D layout (B, C*H*W).
    n = c * hw
    img2 = image.reshape(b, n)
    noi2 = noise.reshape(b, n)
    w_row = jnp.broadcast_to(weight.reshape(c, 1), (c, hw)).reshape(1, n)

    bprpl = 2 * (i_isz + n_isz + o_isz)
    bb, ln = _pick_tiling(b, n, bprpl, budget)

    out = pl.pallas_call(
        _noise_injection_kernel,
        out_shape=jax.ShapeDtypeStruct((b, n), out_dtype),
        grid_spec=pltpu.PrefetchScalarGridSpec(
            num_scalar_prefetch=0,
            grid=(pl.cdiv(b, bb), n // ln),
            in_specs=[
                pl.BlockSpec((1, ln), lambda i, j: (0, j)),      # weight row
                pl.BlockSpec((bb, ln), lambda i, j: (i, j)),     # image
                pl.BlockSpec((bb, ln), lambda i, j: (i, j)),     # noise
            ],
            out_specs=pl.BlockSpec((bb, ln), lambda i, j: (i, j)),
        ),
        compiler_params=compiler_params,
    )(w_row, img2, noi2)
    return out.reshape(b, c, h, w)


if __name__ == "__main__":
    key = jax.random.PRNGKey(0)
    k_w, k_img, k_noise, k_noise1 = jax.random.split(key, 4)

    # Module config: channel=4, spatial=16, batch=2.
    batch, channel, size = 2, 4, 16

    # PyTorch init is zeros; use a random weight so the check is non-trivial.
    weight = jax.random.normal(k_w, (1, channel, 1, 1), jnp.float32)
    image = jax.random.normal(k_img, (batch, channel, size, size), jnp.float32)
    noise = jax.random.normal(k_noise, (batch, channel, size, size), jnp.float32)

    # Full-shape noise path (2-D lane-dense layout).
    out = jax.block_until_ready(noise_injection_2d(weight, image, noise))
    ref = image + weight * noise
    assert out.shape == (batch, channel, size, size)
    assert jnp.allclose(out, ref, atol=1e-6, rtol=1e-6)

    # Channel-broadcast noise path (no wrapper-side materialization).
    noise1 = jax.random.normal(k_noise1, (batch, 1, size, size), jnp.float32)
    out1 = jax.block_until_ready(noise_injection_2d(weight, image, noise1))
    ref1 = image + weight * noise1
    assert out1.shape == (batch, channel, size, size)
    assert jnp.allclose(out1, ref1, atol=1e-6, rtol=1e-6)

    # weight = zeros (the actual PyTorch init) -> identity on image.
    out0 = jax.block_until_ready(
        noise_injection_2d(jnp.zeros_like(weight), image, noise)
    )
    assert jnp.allclose(out0, image, atol=0.0, rtol=0.0)

    print("KERNEL_OK")
</pallas_src>

<mosaic_0001>
module attributes {stable_mosaic.version = 11 : i64} {
  func.func @_noise_injection_kernel(%arg0: i32, %arg1: i32, %arg2: memref<1x512xf32, #tpu.memory_space<vmem>>, %arg3: memref<2x512xf32, #tpu.memory_space<vmem>>, %arg4: memref<2x512xf32, #tpu.memory_space<vmem>>, %arg5: memref<2x512xf32, #tpu.memory_space<vmem>>) attributes {dimension_semantics = [#tpu.dimension_semantics<parallel>, #tpu.dimension_semantics<parallel>], iteration_bounds = array<i64: 1, 2>, scalar_prefetch = 0 : i64, scratch_operands = 0 : i64, tpu.core_type = #tpu.core_type<tc>, window_params = [{transform_indices = @transform_0, window_bounds = array<i64: 1, 512>}, {transform_indices = @transform_1, window_bounds = array<i64: 2, 512>}, {transform_indices = @transform_2, window_bounds = array<i64: 2, 512>}, {transform_indices = @transform_3, window_bounds = array<i64: 2, 512>}]} {
    %c0 = arith.constant 0 : index
    %c0_0 = arith.constant 0 : index
    %0 = vector.load %arg3[%c0, %c0_0] : memref<2x512xf32, #tpu.memory_space<vmem>>, vector<2x512xf32>
    %c0_1 = arith.constant 0 : index
    %c0_2 = arith.constant 0 : index
    %1 = vector.load %arg2[%c0_1, %c0_2] : memref<1x512xf32, #tpu.memory_space<vmem>>, vector<1x512xf32>
    %c0_3 = arith.constant 0 : index
    %c0_4 = arith.constant 0 : index
    %2 = vector.load %arg4[%c0_3, %c0_4] : memref<2x512xf32, #tpu.memory_space<vmem>>, vector<2x512xf32>
    %3 = vector.broadcast %1 : vector<1x512xf32> to vector<2x512xf32>
    %4 = arith.mulf %3, %2 : vector<2x512xf32>
    %5 = arith.addf %0, %4 : vector<2x512xf32>
    %c0_5 = arith.constant 0 : index
    %c0_6 = arith.constant 0 : index
    %6 = vector.load %arg5[%c0_5, %c0_6] : memref<2x512xf32, #tpu.memory_space<vmem>>, vector<2x512xf32>
    tpu.vector_store %arg5[%c0_5, %c0_6], %5 {strides = array<i32>} : memref<2x512xf32, #tpu.memory_space<vmem>>, vector<2x512xf32>,
    return
  }
  func.func @transform_0(%arg0: i32, %arg1: i32) -> (i32, i32) {
    %c0_i32 = arith.constant 0 : i32
    %c0_i32_0 = arith.constant 0 : i32
    return %c0_i32, %arg1 : i32, i32
  }
  func.func @transform_1(%arg0: i32, %arg1: i32) -> (i32, i32) {
    %c0_i32 = arith.constant 0 : i32
    return %arg0, %arg1 : i32, i32
  }
  func.func @transform_2(%arg0: i32, %arg1: i32) -> (i32, i32) {
    %c0_i32 = arith.constant 0 : i32
    return %arg0, %arg1 : i32, i32
  }
  func.func @transform_3(%arg0: i32, %arg1: i32) -> (i32, i32) {
    %c0_i32 = arith.constant 0 : i32
    return %arg0, %arg1 : i32, i32
  }
}

</mosaic_0001>

<llo_original>
// kernel: tpu_custom_call.1
$region0: #{tpu_custom_call.1}
  #allocation0 [shape = 'u32[]', space=smem, size = 0x4, offset = 0x4, fixed_abs, tag = 'smem constant byte address 0x4 - core index']
  #allocation1 [shape = 'u32[144,128]{1,0:T(1,128)}', space=vmem, size = 0x12000, scoped, tag = 'internal scratch']
  %s0 = inlined_call_operand.hbm [shape: f32[1,1024], index: 0, kind: input, shape index: {}]
  %s1 = inlined_call_operand.hbm [shape: f32[2,1024], index: 1, kind: input, shape index: {}]
  %s2 = inlined_call_operand.hbm [shape: f32[2,1024], index: 2, kind: input, shape index: {}]
  %s3 = inlined_call_operand.hbm [shape: f32[2,1024], index: 3, kind: output, shape index: {}]
  %s4 = sld [smem:[#allocation0]]
  $region57: #{tpu_custom_call.1} parent=0
    _
  %s6 = ssub.s32 1, %s4
  %s7 = scalar_select 0, %s6, %s4
  $region1: #{tpu_custom_call.1} parent=0
    #allocation2 [shape = 'u8[4096]{0}', space=vmem, size = 0x1000, scoped, tag = 'input window, operand 0']
    #allocation3 [shape = 's32[2]{0}', space=sflag, size = 0x8, scoped, tag = 'scoped memory for tpu_custom_call.1']
    #allocation4 [shape = 's32[2]{0}', space=sflag, size = 0x8, scoped, tag = 'scoped memory for tpu_custom_call.1']
    #allocation5 [shape = 'u8[8192]{0}', space=vmem, size = 0x2000, scoped, tag = 'input window, operand 1']
    #allocation6 [shape = 's32[2]{0}', space=sflag, size = 0x8, scoped, tag = 'scoped memory for tpu_custom_call.1']
    #allocation7 [shape = 'u8[8192]{0}', space=vmem, size = 0x2000, scoped, tag = 'input window, operand 2']
    #allocation8 [shape = 'u8[8192]{0}', space=vmem, size = 0x2000, scoped, tag = 'output window, operand 0']
    %8 = vsyncpa [#allocation3], 0
    %s9 = scalar_lea.sflag [#allocation3], 1
    %10 = vsyncpa %s9, 0
    %11 = vsyncpa [#allocation6], 0
    %s12 = scalar_lea.sflag [#allocation6], 1
    %13 = vsyncpa %s12, 0
    %14 = vsyncpa [#allocation4], 0
    %s15 = scalar_lea.sflag [#allocation4], 1
    %16 = vsyncpa %s15, 0
    loop: start=0, step=1, limit=4
    $region2: #{tpu_custom_call.1} parent=1 // loop_pre_header
      _
    $region3: #{tpu_custom_call.1} parent=1 // loop_header
      %s18 = sphi 0, %s22
      %p19 = scmp.ge.s32.totalorder %s18, 4
      %s25 = sphi 0, %s37
      %s26 = sphi 0, %s33
      %s27 = sphi 0, %s25
      %s28 = sphi 0, %s26
      %s29 = sphi 0, %s27
      %s30 = sphi 0, %s28
      %s40 = sphi 0, %s42
      %s43 = sphi 0, %s40
      %s44 = sphi 0, %s43
      %s60 = sphi 0, %s44
      %s68 = sphi 0, %s70
      %s71 = sphi 0, %s68
      %s72 = sphi 0, %s71
      %s88 = sphi 0, %s72
      %s96 = sphi 0, %s98
      %s99 = sphi 0, %s96
      %s100 = sphi 0, %s99
      %s116 = sphi 0, %s100
      %s124 = sphi 0, %s126
      %s127 = sphi 0, %s124
      %s128 = sphi 0, %s127
      %s144 = sphi 0, %s128
    $region4: #{tpu_custom_call.1} parent=1 // loop_header_branch
      %21 = sbr.rel (%p19) target = $region8
    $region5: #{tpu_custom_call.1} parent=1 // loop_body
      %s23 = ssub.s32 %s18, 1
      %s24 = ssub.s32 %s18, 2
      %s31 = sadd.s32 1, %s26
      %p32 = scmp.ge.s32.totalorder %s31, 2
      %s33 = scalar_select %p32, 0, %s31
      %s34 = sadd.s32 1, %s25
      %s35 = scalar_select %p32, %s34, %s25
      %p36 = scmp.ge.s32.totalorder %s35, 1
      %s37 = scalar_select %p36, 0, %s35
      %s38 = ssub.s32 %s26, %s33
      %p39 = scmp.eq.s32.totalorder %s38, 0
      %s41 = sadd.s32 %s40, 1
      %s42 = scalar_select %p39, %s40, %s41
      %p45 = pneg %p39
      %p46 = scmp.eq.s32.totalorder %s18, 1
      %p47 = por %p45, %p46
      %p48 = scmp.ne.s32.totalorder %s40, %s43
      %p49 = scmp.eq.s32.totalorder %s18, 0
      %p50 = por %p48, %p49
      %p51 = scmp.ne.s32.totalorder %s40, %s43
      %p52 = scmp.eq.s32.totalorder %s23, 1
      %p53 = por %p51, %p52
      %p54 = scmp.ne.s32.totalorder %s43, %s44
      %p55 = scmp.eq.s32.totalorder %s23, 0
      %p56 = por %p54, %p55
      %p57 = scmp.ne.s32.totalorder %s43, %s44
      %p58 = scmp.eq.s32.totalorder %s24, 1
      %p59 = por %p57, %p58
      %p61 = scmp.ne.s32.totalorder %s44, %s60
      %p62 = scmp.eq.s32.totalorder %s24, 0
      %p63 = por %p61, %p62
      %s64 = ssub.s32 %s25, %s37
      %s65 = ssub.s32 %s26, %s33
      %s66 = sor.u32 %s64, %s65
      %p67 = scmp.eq.s32.totalorder %s66, 0
      %s69 = sadd.s32 %s68, 1
      %s70 = scalar_select %p67, %s68, %s69
      %p73 = pneg %p67
      %p74 = scmp.eq.s32.totalorder %s18, 1
      %p75 = por %p73, %p74
      %p76 = scmp.ne.s32.totalorder %s68, %s71
      %p77 = scmp.eq.s32.totalorder %s18, 0
      %p78 = por %p76, %p77
      %p79 = scmp.ne.s32.totalorder %s68, %s71
      %p80 = scmp.eq.s32.totalorder %s23, 1
      %p81 = por %p79, %p80
      %p82 = scmp.ne.s32.totalorder %s71, %s72
      %p83 = scmp.eq.s32.totalorder %s23, 0
      %p84 = por %p82, %p83
      %p85 = scmp.ne.s32.totalorder %s71, %s72
      %p86 = scmp.eq.s32.totalorder %s24, 1
      %p87 = por %p85, %p86
      %p89 = scmp.ne.s32.totalorder %s72, %s88
      %p90 = scmp.eq.s32.totalorder %s24, 0
      %p91 = por %p89, %p90
      %s92 = ssub.s32 %s25, %s37
      %s93 = ssub.s32 %s26, %s33
      %s94 = sor.u32 %s92, %s93
      %p95 = scmp.eq.s32.totalorder %s94, 0
      %s97 = sadd.s32 %s96, 1
      %s98 = scalar_select %p95, %s96, %s97
      %p101 = pneg %p95
      %p102 = scmp.eq.s32.totalorder %s18, 1
      %p103 = por %p101, %p102
      %p104 = scmp.ne.s32.totalorder %s96, %s99
      %p105 = scmp.eq.s32.totalorder %s18, 0
      %p106 = por %p104, %p105
      %p107 = scmp.ne.s32.totalorder %s96, %s99
      %p108 = scmp.eq.s32.totalorder %s23, 1
      %p109 = por %p107, %p108
      %p110 = scmp.ne.s32.totalorder %s99, %s100
      %p111 = scmp.eq.s32.totalorder %s23, 0
      %p112 = por %p110, %p111
      %p113 = scmp.ne.s32.totalorder %s99, %s100
      %p114 = scmp.eq.s32.totalorder %s24, 1
      %p115 = por %p113, %p114
      %p117 = scmp.ne.s32.totalorder %s100, %s116
      %p118 = scmp.eq.s32.totalorder %s24, 0
      %p119 = por %p117, %p118
      %s120 = ssub.s32 %s25, %s37
      %s121 = ssub.s32 %s26, %s33
      %s122 = sor.u32 %s120, %s121
      %p123 = scmp.eq.s32.totalorder %s122, 0
      %s125 = sadd.s32 %s124, 1
      %s126 = scalar_select %p123, %s124, %s125
      %p129 = pneg %p123
      %p130 = scmp.eq.s32.totalorder %s18, 1
      %p131 = por %p129, %p130
      %p132 = scmp.ne.s32.totalorder %s124, %s127
      %p133 = scmp.eq.s32.totalorder %s18, 0
      %p134 = por %p132, %p133
      %p135 = scmp.ne.s32.totalorder %s124, %s127
      %p136 = scmp.eq.s32.totalorder %s23, 1
      %p137 = por %p135, %p136
      %p138 = scmp.ne.s32.totalorder %s127, %s128
      %p139 = scmp.eq.s32.totalorder %s23, 0
      %p140 = por %p138, %p139
      %p141 = scmp.ne.s32.totalorder %s127, %s128
      %p142 = scmp.eq.s32.totalorder %s24, 1
      %p143 = por %p141, %p142
      %p145 = scmp.ne.s32.totalorder %s128, %s144
      %p146 = scmp.eq.s32.totalorder %s24, 0
      %p147 = por %p145, %p146
      %p148 = scmp.le.s32.totalorder 1, %s18
      %p149 = scmp.lt.s32.totalorder %s18, 3
      %p150 = pnand %p148, %p149
      %p151 = pneg %p150
      // Predicated region
      $region9: #{tpu_custom_call.1} parent=5 // pred_check
        _
      $region10: #{tpu_custom_call.1} parent=5 // pred_check_branch
        %153 = sbr.rel (%p150) target = $region12
      $region11: #{tpu_custom_call.1} parent=5 // pred_region
        %s154 = ssub.s32 %s18, 1
      $region12: #{tpu_custom_call.1} parent=5 // pred_fallthru
        _
      %p155 = scmp.lt.s32.totalorder %s18, 2
      // Predicated region
      $region13: #{tpu_custom_call.1} parent=5 // pred_check
        %p156 = pneg %p155
      $region14: #{tpu_custom_call.1} parent=5 // pred_check_branch
        %158 = sbr.rel (%p156) target = $region16
      $region15: #{tpu_custom_call.1} parent=5 // pred_region
        // Predicated region
        $region17: #{tpu_custom_call.1} parent=15 // pred_check
          %p159 = pneg %p50
        $region18: #{tpu_custom_call.1} parent=15 // pred_check_branch
          %161 = sbr.rel (%p159) target = $region20
        $region19: #{tpu_custom_call.1} parent=15 // pred_region
          %s162 = sand.u32 %s40, 1
          %s163 = scalar_lea.sflag [#allocation3], %s162
          %s164 = sand.u32 %s40, 1
          %s165 = smul.addr %s164, 4
          %s166 = scalar_lea.vmem [#allocation2], %s165
          %s167 = smul.u32 4, %s26
          %s169 = ssub.s32 64, 64
          %170 = vsyncadd %s163, %s169
          %s171 = smul.addr %s167, 16
          %s172 = scalar_lea.hbm %s0, %s171
          %s174 = sshll.u32 %s166, 4
          %s175 = int_to_ptr.vmem [resolvable:$true] %s174
          %177 = dma.hbm_to_vmem [thread:$0]  %s172, 64, %s175, %s163
        $region20: #{tpu_custom_call.1} parent=15 // pred_fallthru
          _
        // Predicated region
        $region21: #{tpu_custom_call.1} parent=15 // pred_check
          %p178 = pneg %p78
        $region22: #{tpu_custom_call.1} parent=15 // pred_check_branch
          %180 = sbr.rel (%p178) target = $region24
        $region23: #{tpu_custom_call.1} parent=15 // pred_region
          %s181 = sand.u32 %s18, 1
          %s182 = scalar_lea.sflag [#allocation6], %s181
          %s183 = sand.u32 %s68, 1
          %s184 = smul.addr %s183, 8
          %s185 = scalar_lea.vmem [#allocation5], %s184
          %s186 = smul.u32 4, %s26
          %s188 = ssub.s32 128, 128
          %189 = vsyncadd %s182, %s188
          %s190 = smul.addr %s25, 8
          %s191 = sadd.s32 %s186, %s190
          %s192 = smul.addr %s191, 32
          %s193 = scalar_lea.hbm %s1, %s192
          %s195 = sshll.u32 %s185, 4
          %s196 = int_to_ptr.vmem [resolvable:$true] %s195
          %198 = dma.hbm_to_vmem [thread:$0]  %s193, 128, %s196, %s182
        $region24: #{tpu_custom_call.1} parent=15 // pred_fallthru
          _
        // Predicated region
        $region25: #{tpu_custom_call.1} parent=15 // pred_check
          %p199 = pneg %p106
        $region26: #{tpu_custom_call.1} parent=15 // pred_check_branch
          %201 = sbr.rel (%p199) target = $region28
        $region27: #{tpu_custom_call.1} parent=15 // pred_region
          %s202 = sand.u32 %s18, 1
          %s203 = scalar_lea.sflag [#allocation6], %s202
          %s204 = sand.u32 %s96, 1
          %s205 = smul.addr %s204, 8
          %s206 = scalar_lea.vmem [#allocation7], %s205
          %s207 = smul.u32 4, %s26
          %s209 = ssub.s32 128, 128
          %210 = vsyncadd %s203, %s209
          %s211 = smul.addr %s25, 8
          %s212 = sadd.s32 %s207, %s211
          %s213 = smul.addr %s212, 32
          %s214 = scalar_lea.hbm %s2, %s213
          %s216 = sshll.u32 %s206, 4
          %s217 = int_to_ptr.vmem [resolvable:$true] %s216
          %219 = dma.hbm_to_vmem [thread:$0]  %s214, 128, %s217, %s203
        $region28: #{tpu_custom_call.1} parent=15 // pred_fallthru
          _
      $region16: #{tpu_custom_call.1} parent=5 // pred_fallthru
        _
      %p220 = scmp.le.s32.totalorder 1, %s18
      %p221 = scmp.lt.s32.totalorder %s18, 3
      %p222 = pnand %p220, %p221
      %p223 = pneg %p222
      // Predicated region
      $region29: #{tpu_custom_call.1} parent=5 // pred_check
        _
      $region30: #{tpu_custom_call.1} parent=5 // pred_check_branch
        %225 = sbr.rel (%p222) target = $region32
      $region31: #{tpu_custom_call.1} parent=5 // pred_region
        %s226 = ssub.s32 %s18, 1
        %s227 = sand.u32 %s43, 1
        %s228 = scalar_lea.sflag [#allocation3], %s227
        %s229 = sand.u32 %s43, 1
        %s230 = smul.addr %s229, 4
        %s231 = scalar_lea.vmem [#allocation2], %s230
        // Predicated region
        $region33: #{tpu_custom_call.1} parent=31 // pred_check
          %p232 = pneg %p56
        $region34: #{tpu_custom_call.1} parent=31 // pred_check_branch
          %234 = sbr.rel (%p232) target = $region36
        $region35: #{tpu_custom_call.1} parent=31 // pred_region
          %235 = dma.done %s228, 64
        $region36: #{tpu_custom_call.1} parent=31 // pred_fallthru
          _
        %s236 = sand.u32 %s23, 1
        %s237 = scalar_lea.sflag [#allocation6], %s236
        %s238 = sand.u32 %s71, 1
        %s239 = smul.addr %s238, 8
        %s240 = scalar_lea.vmem [#allocation5], %s239
        // Predicated region
        $region37: #{tpu_custom_call.1} parent=31 // pred_check
          %p241 = pneg %p84
        $region38: #{tpu_custom_call.1} parent=31 // pred_check_branch
          %243 = sbr.rel (%p241) target = $region40
        $region39: #{tpu_custom_call.1} parent=31 // pred_region
          %244 = dma.done %s237, 128
        $region40: #{tpu_custom_call.1} parent=31 // pred_fallthru
          _
        %s245 = sand.u32 %s23, 1
        %s246 = scalar_lea.sflag [#allocation6], %s245
        %s247 = sand.u32 %s99, 1
        %s248 = smul.addr %s247, 8
        %s249 = scalar_lea.vmem [#allocation7], %s248
        // Predicated region
        $region41: #{tpu_custom_call.1} parent=31 // pred_check
          %p250 = pneg %p112
        $region42: #{tpu_custom_call.1} parent=31 // pred_check_branch
          %252 = sbr.rel (%p250) target = $region44
        $region43: #{tpu_custom_call.1} parent=31 // pred_region
          %253 = dma.done %s246, 128
        $region44: #{tpu_custom_call.1} parent=31 // pred_fallthru
          _
        %s254 = sand.u32 %s43, 1
        %s255 = scalar_lea.sflag [#allocation3], %s254
        %s256 = sand.u32 %s43, 1
        %s257 = smul.addr %s256, 4
        %s258 = scalar_lea.vmem [#allocation2], %s257
        %p259 = pneg %p56
        %p260 = pneg %p53
        %s261 = sand.u32 %s23, 1
        %s262 = scalar_lea.sflag [#allocation6], %s261
        %s263 = sand.u32 %s71, 1
        %s264 = smul.addr %s263, 8
        %s265 = scalar_lea.vmem [#allocation5], %s264
        %p266 = pneg %p84
        %p267 = pneg %p81
        %s268 = sand.u32 %s23, 1
        %s269 = scalar_lea.sflag [#allocation6], %s268
        %s270 = sand.u32 %s99, 1
        %s271 = smul.addr %s270, 8
        %s272 = scalar_lea.vmem [#allocation7], %s271
        %p273 = pneg %p112
        %p274 = pneg %p109
        %p275 = pneg %p140
        %p276 = pneg %p137
        %s277 = sand.u32 %s127, 1
        %s278 = scalar_lea.sflag [#allocation4], %s277
        %s279 = sand.u32 %s127, 1
        %s280 = smul.addr %s279, 8
        %s281 = scalar_lea.vmem [#allocation8], %s280
        %s282 = smul.u32 4, %s28
        %s283 = smul.u32 4, %s28
        %s284 = smul.u32 4, %s28
        %s285 = smul.u32 4, %s28
        %v286 = vld [vmem:[%s240] sm:$0xff]
        %v287 = vld [vmem:[%s231] sm:$0xf]
        %v288 = vld [vmem:[%s249] sm:$0xff]
        %v290 = vlaneseq
        %v291 = vshrl.u32 %v290, 7
        %v292 = vsub.s32 0, %v291
        %v293 = vrot.slane %v287, %v292
        %v294 = vlaneseq
        %v295 = vshrl.u32 %v294, 7
        %v296 = vsub.s32 1, %v295
        %v297 = vrot.slane %v287, %v296
        %v298 = vlaneseq
        %v299 = vshrl.u32 %v298, 7
        %v300 = vsub.s32 2, %v299
        %v301 = vrot.slane %v287, %v300
        %v302 = vlaneseq
        %v303 = vshrl.u32 %v302, 7
        %v304 = vsub.s32 3, %v303
        %v305 = vrot.slane %v287, %v304
        %v311 = vcombine.high %v288, %v288
        %v313 = vunpack.c.l.s4 1983009808
        %v314 = vunpack.c.0.s8 %v313
        %v315 = vlaneseq
        %v316 = vshrl.u32 %v315, 7
        %v317 = vsub.s32 %v314, %v316
        %v318 = vrot.slane %v288, %v317
        %v320 = vunpack.c.l.s4 1983009808
        %v321 = vunpack.c.0.s8 %v320
        %v322 = vlaneseq
        %v323 = vshrl.u32 %v322, 7
        %v324 = vsub.s32 %v321, %v323
        %v325 = vrot.slane %v311, %v324
        %v326 = vcombine.high %v318, %v318
        %v327 = vcombine.high %v325, %v325
        %v332 = vmul.f32 %v293, %v318
        %v333 = vmul.f32 %v297, %v326
        %v334 = vmul.f32 %v301, %v325
        %v335 = vmul.f32 %v305, %v327
        %v340 = vcombine.low %v332, %v333
        %v341 = vcombine.low %v334, %v335
        %v343 = vunpack.c.l.s4 1983009808
        %v344 = vunpack.c.0.s8 %v343
        %v345 = vlaneseq
        %v346 = vshrl.u32 %v345, 7
        %v347 = vsub.s32 %v344, %v346
        %v348 = vrot.slane %v340, %v347
        %v350 = vunpack.c.l.s4 1983009808
        %v351 = vunpack.c.0.s8 %v350
        %v352 = vlaneseq
        %v353 = vshrl.u32 %v352, 7
        %v354 = vsub.s32 %v351, %v353
        %v355 = vrot.slane %v341, %v354
        %v356 = vcombine.low %v348, %v355
        %v358 = vadd.f32 %v286, %v356
        %359 = vst [vmem:[%s281] sm:$0xff] %v358
        %s360 = sand.u32 %s127, 1
        %s361 = scalar_lea.sflag [#allocation4], %s360
        %s362 = sand.u32 %s127, 1
        %s363 = smul.addr %s362, 8
        %s364 = scalar_lea.vmem [#allocation8], %s363
        // Predicated region
        $region45: #{tpu_custom_call.1} parent=31 // pred_check
          %p365 = pneg %p137
        $region46: #{tpu_custom_call.1} parent=31 // pred_check_branch
          %367 = sbr.rel (%p365) target = $region48
        $region47: #{tpu_custom_call.1} parent=31 // pred_region
          %s368 = smul.u32 4, %s28
          %s370 = ssub.s32 128, 128
          %371 = vsyncadd %s361, %s370
          %s372 = smul.addr %s27, 8
          %s373 = sadd.s32 %s368, %s372
          %s374 = smul.addr %s373, 32
          %s375 = scalar_lea.hbm %s3, %s374
          %s377 = sshll.u32 %s364, 4
          %s378 = int_to_ptr.vmem [resolvable:$true] %s377
          %380 = dma.vmem_to_hbm [thread:$0]  %s378, 128, %s375, %s361
        $region48: #{tpu_custom_call.1} parent=31 // pred_fallthru
          _
      $region32: #{tpu_custom_call.1} parent=5 // pred_fallthru
        _
      %p381 = scmp.le.s32.totalorder 2, %s18
      // Predicated region
      $region49: #{tpu_custom_call.1} parent=5 // pred_check
        %p382 = pneg %p381
      $region50: #{tpu_custom_call.1} parent=5 // pred_check_branch
        %384 = sbr.rel (%p382) target = $region52
      $region51: #{tpu_custom_call.1} parent=5 // pred_region
        %s385 = ssub.s32 %s18, 2
        // Predicated region
        $region53: #{tpu_custom_call.1} parent=51 // pred_check
          %p386 = pneg %p143
        $region54: #{tpu_custom_call.1} parent=51 // pred_check_branch
          %388 = sbr.rel (%p386) target = $region56
        $region55: #{tpu_custom_call.1} parent=51 // pred_region
          %s389 = sand.u32 %s128, 1
          %s390 = scalar_lea.sflag [#allocation4], %s389
          %s391 = sand.u32 %s128, 1
          %s392 = smul.addr %s391, 8
          %s393 = scalar_lea.vmem [#allocation8], %s392
          %394 = dma.done %s390, 128
        $region56: #{tpu_custom_call.1} parent=51 // pred_fallthru
          _
      $region52: #{tpu_custom_call.1} parent=5 // pred_fallthru
        _
    $region6: #{tpu_custom_call.1} parent=1 // loop_footer
      %s22 = sadd.s32 1, %s18
    $region7: #{tpu_custom_call.1} parent=1 // loop_footer_branch
      %17 = sbr.rel target = $region3
    $region8: #{tpu_custom_call.1} parent=1 // loop_exit
      _
    %395 = vsyncpa [#allocation3], 1
    %s396 = scalar_lea.sflag [#allocation3], 1
    %397 = vsyncpa %s396, 1
    %398 = vsyncpa [#allocation6], 1
    %s399 = scalar_lea.sflag [#allocation6], 1
    %400 = vsyncpa %s399, 1
    %401 = vsyncpa [#allocation4], 1
    %s402 = scalar_lea.sflag [#allocation4], 1
    %403 = vsyncpa %s402, 1

</llo_original>
